<compile_context>
chip_gen: v6e
topology: v6e:2x2x1
jax: 0.10.0
libtpu: 0.0.40
codegen_flags: <defaults>
</compile_context>

<pallas_src>
import functools
import math

import numpy as np
import jax
import jax.numpy as jnp
from jax.experimental import pallas as pl
from jax.experimental.pallas import tpu as pltpu


# ----------------------------------------------------------------------------
# Parameter glue: compute ONLY the single PE row the module adds (row index T).
# ----------------------------------------------------------------------------
@functools.lru_cache(maxsize=None)
def _pe_row_np(t: int, d_model: int) -> np.ndarray:
    """pe[t, :] of the sinusoidal table, computed directly in float32."""
    div_term = np.exp(
        np.arange(0, d_model, 2, dtype=np.float32) * np.float32(-np.log(10000.0) / d_model)
    )
    row = np.zeros((d_model,), dtype=np.float32)
    row[0::2] = np.sin(np.float32(t) * div_term)
    row[1::2] = np.cos(np.float32(t) * div_term)
    return row


# ----------------------------------------------------------------------------
# Pallas kernels
# ----------------------------------------------------------------------------
def _pe_add_kernel(pe_ref, x_ref, o_ref):
    # pe_ref: (1, W) lane-dense row, broadcast over the (tm, W) tile. vld + vadd + vst.
    o_ref[...] = x_ref[...] + pe_ref[...]


def _hash_u32(x):
    # splitmix32-style finalizer: strong avalanche, pure elementwise VPU integer ops.
    x = (x ^ (x >> jnp.uint32(16))) * jnp.uint32(0x7FEB352D)
    x = (x ^ (x >> jnp.uint32(15))) * jnp.uint32(0x846CA68B)
    x = x ^ (x >> jnp.uint32(16))
    return x


def _pe_add_dropout_kernel(seed_ref, pe_ref, x_ref, o_ref, *, p):
    tm, W = x_ref.shape
    # Add in x.dtype (bf16-native on v6e/v7x; compiler upcasts on v5e).
    y = x_ref[...] + pe_ref[...]

    # Counter-based PRNG: hash(global element index, seed). Mask is independent of tm.
    # TODO(synk): cannot bit-match torch's RNG stream; keep-prob and 1/(1-p) scaling match.
    row0 = (pl.program_id(0) * tm).astype(jnp.uint32)
    r = jax.lax.broadcasted_iota(jnp.uint32, (tm, W), 0)
    c = jax.lax.broadcasted_iota(jnp.uint32, (tm, W), 1)
    idx = (row0 + r) * jnp.uint32(W) + c
    seed_u = seed_ref[0].astype(jnp.uint32)
    bits = _hash_u32(idx + seed_u * jnp.uint32(0x9E3779B9))

    threshold = jnp.uint32(min(int(round(p * float(2 ** 32))), 2 ** 32 - 1))
    inv_keep = 1.0 / (1.0 - p)
    # Fused mask * scale: one select + one multiply per element.
    factor = jnp.where(bits >= threshold, inv_keep, 0.0).astype(y.dtype)
    o_ref[...] = (y * factor).astype(o_ref.dtype)


# ----------------------------------------------------------------------------
# Layout selection: lane-dense folding + big row tiles.
# ----------------------------------------------------------------------------
def _choose_layout(M: int, D: int, itemsize: int):
    sub = max(8, 32 // itemsize)          # dtype-native sublane multiple (8 f32, 16 bf16, 32 i8)
    lane_cap = 1024                       # folded width cap: 8 f32 vregs per row

    k_min = 128 // math.gcd(D, 128)       # minimal fold making the last dim a multiple of 128
    if k_min * D <= lane_cap:
        k = k_min
        pad_rows = (-M) % k               # zero-padded rows so M folds evenly (no masked stores)
        while (M + pad_rows) % (2 * k) == 0 and 2 * k * D <= lane_cap:
            k *= 2
    else:
        # D itself is very wide; use it directly (full-extent last dim is always legal).
        k, pad_rows = 1, 0

    W = k * D
    rows = (M + pad_rows) // k

    # ~4 MiB per pipeline buffer; 2-in + 2-out double buffering ~= 16 MiB, well inside the
    # explicit 32 MiB VMEM limit on v5e/v6e/v7x.  No artificial row cap.
    tile_bytes = 4 * 1024 * 1024
    tm = max(sub, (tile_bytes // (W * itemsize)) // sub * sub)
    if rows <= tm:
        if rows < 2 * sub:
            tm = rows                     # tiny input: single full-extent block
        else:
            # Guarantee >= 2 grid steps so both v7x TensorCores get work.
            tm = ((rows + 1) // 2 + sub - 1) // sub * sub
    return k, W, rows, tm, pad_rows


# ----------------------------------------------------------------------------
# Wrapper
# ----------------------------------------------------------------------------
def positional_encoding_st(
    x: jnp.ndarray,
    *,
    max_len: int = 5000,
    dropout_p: float = 0.1,
    training: bool = False,
    seed: int = 0,
) -> jnp.ndarray:
    """Forward pass of PositionalEncodingST. x: (B, T, J, D)."""
    B, T, J, D = x.shape
    assert T < max_len, "x.shape[1] indexes the pe table and must be < max_len"
    assert D % 2 == 0, "d_model must be even (same restriction as the torch module)"
    assert 0.0 <= dropout_p < 1.0

    M = B * T * J
    itemsize = x.dtype.itemsize
    k, W, rows, tm, pad_rows = _choose_layout(M, D, itemsize)

    # Single PE row, tiled k times to the lane-dense folded width (layout plumbing only).
    # Note: pe is cast to x.dtype; for bf16 inputs this differs by one rounding from the
    # torch f32-buffer add (flagged, negligible).
    pe_row = jnp.asarray(np.tile(_pe_row_np(T, D), k).reshape(1, W), dtype=x.dtype)

    flat = x.reshape(M * D)
    if pad_rows:
        flat = jnp.concatenate([flat, jnp.zeros((pad_rows * D,), x.dtype)])
    x2 = flat.reshape(rows, W)

    grid = (pl.cdiv(rows, tm),)
    cp = pltpu.CompilerParams(
        dimension_semantics=("parallel",),
        vmem_limit_bytes=32 * 1024 * 1024,
    )
    out_shape = jax.ShapeDtypeStruct((rows, W), x.dtype)
    io_bytes = (2 * rows * W + W) * itemsize

    if training and dropout_p > 0.0:
        cost = pl.CostEstimate(flops=14 * rows * W, transcendentals=0, bytes_accessed=io_bytes)
        kernel = functools.partial(_pe_add_dropout_kernel, p=float(dropout_p))
        out2 = pl.pallas_call(
            kernel,
            out_shape=out_shape,
            grid_spec=pltpu.PrefetchScalarGridSpec(
                num_scalar_prefetch=1,  # dropout seed in SMEM
                grid=grid,
                in_specs=[
                    pl.BlockSpec((1, W), lambda i, seed_ref: (0, 0)),   # shared pe row
                    pl.BlockSpec((tm, W), lambda i, seed_ref: (i, 0)),  # x tile
                ],
                out_specs=pl.BlockSpec((tm, W), lambda i, seed_ref: (i, 0)),
            ),
            compiler_params=cp,
            cost_estimate=cost,
        )(jnp.array([seed], dtype=jnp.int32), pe_row, x2)
    else:
        # Eval / p==0 path: no seed arg, no scalar prefetch.
        cost = pl.CostEstimate(flops=rows * W, transcendentals=0, bytes_accessed=io_bytes)
        out2 = pl.pallas_call(
            _pe_add_kernel,
            out_shape=out_shape,
            grid_spec=pltpu.PrefetchScalarGridSpec(
                num_scalar_prefetch=0,
                grid=grid,
                in_specs=[
                    pl.BlockSpec((1, W), lambda i: (0, 0)),
                    pl.BlockSpec((tm, W), lambda i: (i, 0)),
                ],
                out_specs=pl.BlockSpec((tm, W), lambda i: (i, 0)),
            ),
            compiler_params=cp,
            cost_estimate=cost,
        )(pe_row, x2)

    out_flat = out2.reshape(rows * W)
    if pad_rows:
        out_flat = out_flat[: M * D]
    return out_flat.reshape(B, T, J, D)


# ----------------------------------------------------------------------------
# Pure-JAX reference (mirrors the PyTorch module construction exactly, eval mode).
# ----------------------------------------------------------------------------
def positional_encoding_st_ref(x, *, max_len: int = 5000):
    D = x.shape[-1]
    position = jnp.arange(0, max_len, dtype=jnp.float32)[:, None]
    div_term = jnp.exp(jnp.arange(0, D, 2, dtype=jnp.float32) * (-np.log(10000.0) / D))
    pe = jnp.zeros((max_len, D), dtype=jnp.float32)
    pe = pe.at[:, 0::2].set(jnp.sin(position * div_term))
    pe = pe.at[:, 1::2].set(jnp.cos(position * div_term))
    pe = pe[None, :, None, :].astype(x.dtype)               # (1, max_len, 1, d_model)
    return x + pe[:, x.shape[1], :, :]                      # eval: dropout = identity


if __name__ == "__main__":
    key = jax.random.PRNGKey(0)
    B, T, J, D = 2, 8, 4, 32                 # batch, seq, joints, d_model
    x = jax.random.normal(key, (B, T, J, D), dtype=jnp.float32)

    # Eval mode (dropout = identity): deterministic, checked against reference.
    ref = positional_encoding_st_ref(x)
    out = positional_encoding_st(x, dropout_p=0.1, training=False)
    out = jax.block_until_ready(out)
    np.testing.assert_allclose(np.asarray(out), np.asarray(ref), rtol=1e-5, atol=1e-5)

    # Training mode: exercise the dropout path (statistics, not bit-exact vs torch RNG).
    out_tr = positional_encoding_st(x, dropout_p=0.1, training=True, seed=123)
    out_tr = jax.block_until_ready(out_tr)
    out_tr_np = np.asarray(out_tr)
    drop_frac = float(np.mean(out_tr_np == 0.0))
    assert 0.02 < drop_frac < 0.25, f"unexpected dropout fraction {drop_frac}"
    # Kept elements are scaled by 1/(1-p) relative to the eval output.
    kept = out_tr_np != 0.0
    np.testing.assert_allclose(out_tr_np[kept], (np.asarray(ref) / (1.0 - 0.1))[kept],
                               rtol=1e-5, atol=1e-5)

    print("KERNEL_OK")
</pallas_src>

<mosaic_0001>
module attributes {stable_mosaic.version = 11 : i64} {
  func.func @_pe_add_kernel(%arg0: i32, %arg1: memref<1x1024xf32, #tpu.memory_space<vmem>>, %arg2: memref<2x1024xf32, #tpu.memory_space<vmem>>, %arg3: memref<2x1024xf32, #tpu.memory_space<vmem>>) attributes {dimension_semantics = [#tpu.dimension_semantics<parallel>], iteration_bounds = array<i64: 1>, scalar_prefetch = 0 : i64, scratch_operands = 0 : i64, tpu.core_type = #tpu.core_type<tc>, window_params = [{pipeline_mode = #tpu.pipeline_mode<synchronous>, transform_indices = @transform_0, window_bounds = array<i64: 1, 1024>}, {transform_indices = @transform_1, window_bounds = array<i64: 2, 1024>}, {transform_indices = @transform_2, window_bounds = array<i64: 2, 1024>}]} {
    %c0 = arith.constant 0 : index
    %c0_0 = arith.constant 0 : index
    %0 = vector.load %arg2[%c0, %c0_0] : memref<2x1024xf32, #tpu.memory_space<vmem>>, vector<2x1024xf32>
    %c0_1 = arith.constant 0 : index
    %c0_2 = arith.constant 0 : index
    %1 = vector.load %arg1[%c0_1, %c0_2] : memref<1x1024xf32, #tpu.memory_space<vmem>>, vector<1x1024xf32>
    %2 = vector.broadcast %1 : vector<1x1024xf32> to vector<2x1024xf32>
    %3 = arith.addf %0, %2 : vector<2x1024xf32>
    %c0_3 = arith.constant 0 : index
    %c0_4 = arith.constant 0 : index
    %4 = vector.load %arg3[%c0_3, %c0_4] : memref<2x1024xf32, #tpu.memory_space<vmem>>, vector<2x1024xf32>
    tpu.vector_store %arg3[%c0_3, %c0_4], %3 {strides = array<i32>} : memref<2x1024xf32, #tpu.memory_space<vmem>>, vector<2x1024xf32>,
    return
  }
  func.func @transform_0(%arg0: i32) -> (i32, i32) {
    %c0_i32 = arith.constant 0 : i32
    %c0_i32_0 = arith.constant 0 : i32
    %c0_i32_1 = arith.constant 0 : i32
    return %c0_i32, %c0_i32_0 : i32, i32
  }
  func.func @transform_1(%arg0: i32) -> (i32, i32) {
    %c0_i32 = arith.constant 0 : i32
    %c0_i32_0 = arith.constant 0 : i32
    return %arg0, %c0_i32 : i32, i32
  }
  func.func @transform_2(%arg0: i32) -> (i32, i32) {
    %c0_i32 = arith.constant 0 : i32
    %c0_i32_0 = arith.constant 0 : i32
    return %arg0, %c0_i32 : i32, i32
  }
}

</mosaic_0001>

<llo_original>
// kernel: tpu_custom_call.1
$region0: #{tpu_custom_call.1}
  #allocation0 [shape = 'u32[]', space=smem, size = 0x4, offset = 0x4, fixed_abs, tag = 'smem constant byte address 0x4 - core index']
  #allocation1 [shape = 'u32[144,128]{1,0:T(1,128)}', space=vmem, size = 0x12000, scoped, tag = 'internal scratch']
  %s0 = inlined_call_operand.hbm [shape: f32[1,1024], index: 0, kind: input, shape index: {}]
  %s1 = inlined_call_operand.hbm [shape: f32[2,1024], index: 1, kind: input, shape index: {}]
  %s2 = inlined_call_operand.hbm [shape: f32[2,1024], index: 2, kind: output, shape index: {}]
  %s3 = sld [smem:[#allocation0]]
  $region26: #{tpu_custom_call.1} parent=0
    _
  %s5 = ssub.s32 1, %s3
  %s6 = scalar_select 0, %s5, %s3
  $region1: #{tpu_custom_call.1} parent=0
    #allocation2 [shape = 'u8[4096]{0}', space=vmem, size = 0x1000, scoped, tag = 'input window, operand 0, single buffered']
    #allocation3 [shape = 's32[1]{0}', space=sflag, size = 0x4, scoped, tag = 'scoped memory for tpu_custom_call.1']
    #allocation4 [shape = 's32[1]{0}', space=sflag, size = 0x4, scoped, tag = 'scoped memory for tpu_custom_call.1']
    #allocation5 [shape = 'u8[8192]{0}', space=vmem, size = 0x2000, scoped, tag = 'input window, operand 1, single buffered']
    #allocation6 [shape = 's32[1]{0}', space=sflag, size = 0x4, scoped, tag = 'scoped memory for tpu_custom_call.1']
    #allocation7 [shape = 'u8[8192]{0}', space=vmem, size = 0x2000, scoped, tag = 'output window, operand 0, single buffered']
    %7 = vsyncpa [#allocation3], 0
    %8 = vsyncpa [#allocation6], 0
    %9 = vsyncpa [#allocation4], 0
    // Predicated region
    $region2: #{tpu_custom_call.1} parent=1 // pred_check
      _
    $region3: #{tpu_custom_call.1} parent=1 // pred_check_branch
      %11 = sbr.rel (0) target = $region5
    $region4: #{tpu_custom_call.1} parent=1 // pred_region
      %s13 = ssub.s32 128, 128
      %14 = vsyncadd [#allocation3], %s13
      %s16 = sshll.u32 [#allocation2], 4
      %s17 = int_to_ptr.vmem [resolvable:$true] %s16
      %19 = dma.hbm_to_vmem [thread:$0]  %s0, 128, %s17, [#allocation3]
    $region5: #{tpu_custom_call.1} parent=1 // pred_fallthru
      _
    // Predicated region
    $region6: #{tpu_custom_call.1} parent=1 // pred_check
      _
    $region7: #{tpu_custom_call.1} parent=1 // pred_check_branch
      %21 = sbr.rel (0) target = $region9
    $region8: #{tpu_custom_call.1} parent=1 // pred_region
      %s23 = ssub.s32 256, 256
      %24 = vsyncadd [#allocation6], %s23
      %s26 = sshll.u32 [#allocation5], 4
      %s27 = int_to_ptr.vmem [resolvable:$true] %s26
      %29 = dma.hbm_to_vmem [thread:$0]  %s1, 256, %s27, [#allocation6]
    $region9: #{tpu_custom_call.1} parent=1 // pred_fallthru
      _
    // Predicated region
    $region10: #{tpu_custom_call.1} parent=1 // pred_check
      _
    $region11: #{tpu_custom_call.1} parent=1 // pred_check_branch
      %31 = sbr.rel (0) target = $region13
    $region12: #{tpu_custom_call.1} parent=1 // pred_region
      %32 = dma.done [#allocation3], 128
    $region13: #{tpu_custom_call.1} parent=1 // pred_fallthru
      _
    // Predicated region
    $region14: #{tpu_custom_call.1} parent=1 // pred_check
      _
    $region15: #{tpu_custom_call.1} parent=1 // pred_check_branch
      %34 = sbr.rel (0) target = $region17
    $region16: #{tpu_custom_call.1} parent=1 // pred_region
      %35 = dma.done [#allocation6], 256
    $region17: #{tpu_custom_call.1} parent=1 // pred_fallthru
      _
    %v36 = vld [vmem:[#allocation5] sm:$0xff]
    %v37 = vld [vmem:[#allocation5 + $0x8] sm:$0xff]
    %v38 = vld [vmem:[#allocation2] sm:$0xff]
    %v40 = vlaneseq
    %v41 = vshrl.u32 %v40, 7
    %v42 = vsub.s32 0, %v41
    %v43 = vrot.slane %v38, %v42
    %v44 = vlaneseq
    %v45 = vshrl.u32 %v44, 7
    %v46 = vsub.s32 1, %v45
    %v47 = vrot.slane %v38, %v46
    %v48 = vlaneseq
    %v49 = vshrl.u32 %v48, 7
    %v50 = vsub.s32 2, %v49
    %v51 = vrot.slane %v38, %v50
    %v52 = vlaneseq
    %v53 = vshrl.u32 %v52, 7
    %v54 = vsub.s32 3, %v53
    %v55 = vrot.slane %v38, %v54
    %v56 = vlaneseq
    %v57 = vshrl.u32 %v56, 7
    %v58 = vsub.s32 4, %v57
    %v59 = vrot.slane %v38, %v58
    %v60 = vlaneseq
    %v61 = vshrl.u32 %v60, 7
    %v62 = vsub.s32 5, %v61
    %v63 = vrot.slane %v38, %v62
    %v64 = vlaneseq
    %v65 = vshrl.u32 %v64, 7
    %v66 = vsub.s32 6, %v65
    %v67 = vrot.slane %v38, %v66
    %v68 = vlaneseq
    %v69 = vshrl.u32 %v68, 7
    %v70 = vsub.s32 7, %v69
    %v71 = vrot.slane %v38, %v70
    %v72 = vcombine.low %v43, %v47
    %v73 = vcombine.low %v51, %v55
    %v75 = vunpack.c.l.s4 1983009808
    %v76 = vunpack.c.0.s8 %v75
    %v77 = vlaneseq
    %v78 = vshrl.u32 %v77, 7
    %v79 = vsub.s32 %v76, %v78
    %v80 = vrot.slane %v72, %v79
    %v82 = vunpack.c.l.s4 1983009808
    %v83 = vunpack.c.0.s8 %v82
    %v84 = vlaneseq
    %v85 = vshrl.u32 %v84, 7
    %v86 = vsub.s32 %v83, %v85
    %v87 = vrot.slane %v73, %v86
    %v88 = vcombine.low %v80, %v87
    %v89 = vcombine.low %v59, %v63
    %v90 = vcombine.low %v67, %v71
    %v92 = vunpack.c.l.s4 1983009808
    %v93 = vunpack.c.0.s8 %v92
    %v94 = vlaneseq
    %v95 = vshrl.u32 %v94, 7
    %v96 = vsub.s32 %v93, %v95
    %v97 = vrot.slane %v89, %v96
    %v99 = vunpack.c.l.s4 1983009808
    %v100 = vunpack.c.0.s8 %v99
    %v101 = vlaneseq
    %v102 = vshrl.u32 %v101, 7
    %v103 = vsub.s32 %v100, %v102
    %v104 = vrot.slane %v90, %v103
    %v105 = vcombine.low %v97, %v104
    %v108 = vadd.f32 %v36, %v88
    %v109 = vadd.f32 %v37, %v105
    %110 = vst [vmem:[#allocation7] sm:$0xff] %v108
    %111 = vst [vmem:[#allocation7 + $0x8] sm:$0xff] %v109
    // Predicated region
    $region18: #{tpu_custom_call.1} parent=1 // pred_check
      _
    $region19: #{tpu_custom_call.1} parent=1 // pred_check_branch
      %113 = sbr.rel (0) target = $region21
    $region20: #{tpu_custom_call.1} parent=1 // pred_region
      %s115 = ssub.s32 256, 256
      %116 = vsyncadd [#allocation4], %s115
      %s118 = sshll.u32 [#allocation7], 4
      %s119 = int_to_ptr.vmem [resolvable:$true] %s118
      %121 = dma.vmem_to_hbm [thread:$0]  %s119, 256, %s2, [#allocation4]
    $region21: #{tpu_custom_call.1} parent=1 // pred_fallthru
      _
    // Predicated region
    $region22: #{tpu_custom_call.1} parent=1 // pred_check
      _
    $region23: #{tpu_custom_call.1} parent=1 // pred_check_branch
      %123 = sbr.rel (0) target = $region25
    $region24: #{tpu_custom_call.1} parent=1 // pred_region
      %124 = dma.done [#allocation4], 256
    $region25: #{tpu_custom_call.1} parent=1 // pred_fallthru
      _
    %125 = vsyncpa [#allocation3], 1
    %126 = vsyncpa [#allocation6], 1
    %127 = vsyncpa [#allocation4], 1

</llo_original>
